<compile_context>
chip_gen: v5e
topology: v5e:2x2
jax: 0.10.0
libtpu: 0.0.40
codegen_flags: <defaults>
</compile_context>

<pallas_src>
import functools

import jax
import jax.numpy as jnp
from jax.experimental import pallas as pl
from jax.experimental.pallas import tpu as pltpu

HIDDEN1 = 512
HIDDEN2 = 256


def _round_up(n, m):
    return ((n + m - 1) // m) * m


def _cdiv(a, b):
    return (a + b - 1) // b


def _vmem_capacity_bytes():
    try:
        return int(pltpu.get_tpu_info().vmem_capacity_bytes)
    except Exception:
        return 128 << 20  # v5e / v6e default


# ---------------------------------------------------------------------------
# Kernels
# ---------------------------------------------------------------------------
def _mlp_kernel(x_ref, w1_ref, b1_ref, w2_ref, b2_ref, w3_ref, b3_ref, o_ref):
    """Fused 3-layer MLP for one batch tile (W1 fully VMEM-resident)."""
    cd = w1_ref.dtype  # bf16 compute dtype; x is cast in-kernel (VPU, free-ish)
    h1 = jnp.dot(x_ref[...].astype(cd), w1_ref[...],
                 preferred_element_type=jnp.float32)
    h1 = jnp.maximum(h1 + b1_ref[...], 0.0)
    h2 = jnp.dot(h1.astype(cd), w2_ref[...],
                 preferred_element_type=jnp.float32)
    h2 = jnp.maximum(h2 + b2_ref[...], 0.0)
    out = jnp.dot(h2.astype(cd), w3_ref[...],
                  preferred_element_type=jnp.float32) + b3_ref[...]
    o_ref[...] = out.astype(o_ref.dtype)


def _mlp_kernel_ktiled(x_ref, w1_ref, b1_ref, w2_ref, b2_ref, w3_ref, b3_ref,
                       o_ref, acc_ref, *, in_len):
    """Same MLP, but layer-1's K dimension is streamed (W1 not resident)."""
    cd = w1_ref.dtype
    k = pl.program_id(1)
    nk = pl.num_programs(1)
    tk = x_ref.shape[1]

    @pl.when(k == 0)
    def _():
        acc_ref[...] = jnp.zeros_like(acc_ref)

    # Mask the (possibly ragged) last K block so out-of-bounds data (which is
    # unspecified, possibly NaN) never reaches the MXU accumulation.
    col = k * tk + jax.lax.broadcasted_iota(jnp.int32, x_ref.shape, 1)
    x_blk = jnp.where(col < in_len, x_ref[...], jnp.zeros_like(x_ref[...]))
    row = k * tk + jax.lax.broadcasted_iota(jnp.int32, w1_ref.shape, 0)
    w1_blk = jnp.where(row < in_len, w1_ref[...], jnp.zeros_like(w1_ref[...]))

    acc_ref[...] += jnp.dot(x_blk.astype(cd), w1_blk,
                            preferred_element_type=jnp.float32)

    @pl.when(k == nk - 1)
    def _():
        h1 = jnp.maximum(acc_ref[...] + b1_ref[...], 0.0)
        h2 = jnp.dot(h1.astype(cd), w2_ref[...],
                     preferred_element_type=jnp.float32)
        h2 = jnp.maximum(h2 + b2_ref[...], 0.0)
        out = jnp.dot(h2.astype(cd), w3_ref[...],
                      preferred_element_type=jnp.float32) + b3_ref[...]
        o_ref[...] = out.astype(o_ref.dtype)


# ---------------------------------------------------------------------------
# Wrapper
# ---------------------------------------------------------------------------
def prepare_params(params, compute_dtype=jnp.bfloat16):
    """One-time cast of weights (bf16) / biases (f32). Call OUTSIDE the jit."""
    def bias2d(b):
        return b.reshape(1, -1).astype(jnp.float32)
    return {
        "w1": params["w1"].astype(compute_dtype),
        "w2": params["w2"].astype(compute_dtype),
        "w3": params["w3"].astype(compute_dtype),
        "b1": bias2d(params["b1"]),
        "b2": bias2d(params["b2"]),
        "b3": bias2d(params["b3"]),
    }


def _resident_spec(a, grid_ndim):
    # Grid-invariant operand: full-array block, single-buffered (halves its
    # VMEM residency; it is fetched once and reused every grid step).
    if grid_ndim == 1:
        idx = lambda i: (0,) * a.ndim
    else:
        idx = lambda i, k: (0,) * a.ndim
    return pl.BlockSpec(a.shape, idx, pipeline_mode=pl.Buffered(1))


def combiner_network_forward(x, prepared, *, batch_block=None, out_dtype=None,
                             k_block=512):
    """Fused 3-layer MLP forward in a single Pallas TPU kernel.

    x: [B, input_len] (any float dtype; cast to bf16 inside the kernel)
    prepared: output of prepare_params().
    """
    w1, b1 = prepared["w1"], prepared["b1"]
    w2, b2 = prepared["w2"], prepared["b2"]
    w3, b3 = prepared["w3"], prepared["b3"]

    B, in_len = x.shape
    out_len = w3.shape[1]
    if out_dtype is None:
        out_dtype = x.dtype          # pass bf16 here if the consumer tolerates it
    cd_size = w1.dtype.itemsize      # bf16 -> 2
    x_size = x.dtype.itemsize
    o_size = jnp.dtype(out_dtype).itemsize

    vmem_cap = _vmem_capacity_bytes()
    small_vmem = vmem_cap < (96 << 20)   # v7x-class: 64 MiB per TC, 2 TCs/chip

    # ---- batch tile (generation-aware) ------------------------------------
    if batch_block is None:
        cap = 256 if small_vmem else 512   # v5e/v6e (128 MiB VMEM) -> 512 rows
        batch_block = min(cap, _round_up(B, 8))
        # v7x has 2 TensorCores: ensure >=2 "parallel" grid steps when possible.
        if small_vmem and B >= 16 and _cdiv(B, batch_block) < 2:
            batch_block = _round_up(_cdiv(B, 2), 8)
    batch_block = max(8, _round_up(batch_block, 8))
    B_pad = _round_up(B, batch_block)
    n_bb = B_pad // batch_block

    # Batch-only pad (no feature pad, no cast) and only when strictly needed.
    xp = x if B_pad == B else jnp.pad(x, ((0, B_pad - B), (0, 0)))

    def nbytes(a):
        return a.size * a.dtype.itemsize

    # ---- VMEM self-estimate (includes bf16 h1/h2 copies + f32 out tile) ---
    w1_bytes = nbytes(w1)
    w_rest_bytes = sum(nbytes(a) for a in (w2, w3, b1, b2, b3))
    inter_bytes = batch_block * (in_len * cd_size            # bf16 x copy
                                 + HIDDEN1 * (4 + cd_size)   # f32 + bf16 h1
                                 + HIDDEN2 * (4 + cd_size)   # f32 + bf16 h2
                                 + out_len * 4)              # f32 out tile
    o_buf_bytes = 2 * batch_block * out_len * o_size
    n_x_buf = min(2, n_bb)
    x_buf_bytes = n_x_buf * batch_block * in_len * x_size
    est_resident = (w1_bytes + w_rest_bytes + x_buf_bytes + o_buf_bytes
                    + inter_bytes)

    # K-tile layer 1 only when a resident W1 (+ x buffers) would crowd VMEM.
    use_k_tiling = in_len >= 2 * k_block and est_resident > 0.55 * vmem_cap

    if not use_k_tiling:
        grid = (n_bb,)
        kernel = _mlp_kernel
        dims = ("parallel",)
        in_specs = [
            pl.BlockSpec((batch_block, in_len), lambda i: (i, 0),
                         pipeline_mode=pl.Buffered(n_x_buf)),
            _resident_spec(w1, 1), _resident_spec(b1, 1),
            _resident_spec(w2, 1), _resident_spec(b2, 1),
            _resident_spec(w3, 1), _resident_spec(b3, 1),
        ]
        out_spec = pl.BlockSpec((batch_block, out_len), lambda i: (i, 0))
        scratch_shapes = []
        est = est_resident
    else:
        n_kb = _cdiv(in_len, k_block)
        grid = (n_bb, n_kb)
        kernel = functools.partial(_mlp_kernel_ktiled, in_len=in_len)
        dims = ("parallel", "arbitrary")
        in_specs = [
            pl.BlockSpec((batch_block, k_block), lambda i, k: (i, k),
                         pipeline_mode=pl.Buffered(2)),
            pl.BlockSpec((k_block, HIDDEN1), lambda i, k: (k, 0),
                         pipeline_mode=pl.Buffered(2)),
            _resident_spec(b1, 2),
            _resident_spec(w2, 2), _resident_spec(b2, 2),
            _resident_spec(w3, 2), _resident_spec(b3, 2),
        ]
        out_spec = pl.BlockSpec((batch_block, out_len), lambda i, k: (i, 0))
        scratch_shapes = [pltpu.VMEM((batch_block, HIDDEN1), jnp.float32)]
        est = (w_rest_bytes + o_buf_bytes + inter_bytes
               + 2 * (batch_block * k_block * x_size
                      + k_block * HIDDEN1 * cd_size)
               + batch_block * HIDDEN1 * 4)        # f32 accumulator scratch

    # Generation-aware VMEM cap: never request more than ~87.5% of physical.
    vmem_limit = int(min(1.5 * est + (8 << 20), 0.875 * vmem_cap))

    flops = 2 * B_pad * (in_len * HIDDEN1 + HIDDEN1 * HIDDEN2
                         + HIDDEN2 * out_len)
    bytes_accessed = int(nbytes(xp) + w1_bytes + w_rest_bytes
                         + B_pad * out_len * o_size)
    cost = pl.CostEstimate(flops=int(flops), transcendentals=0,
                           bytes_accessed=bytes_accessed)

    out = pl.pallas_call(
        kernel,
        out_shape=jax.ShapeDtypeStruct((B_pad, out_len), out_dtype),
        grid_spec=pltpu.PrefetchScalarGridSpec(
            num_scalar_prefetch=0,
            grid=grid,
            in_specs=in_specs,
            out_specs=out_spec,
            scratch_shapes=scratch_shapes,
        ),
        compiler_params=pltpu.CompilerParams(
            dimension_semantics=dims,
            vmem_limit_bytes=vmem_limit,
        ),
        cost_estimate=cost,
    )(xp, w1, b1, w2, b2, w3, b3)

    return out if B_pad == B else out[:B]


# ---------------------------------------------------------------------------
# Params / reference
# ---------------------------------------------------------------------------
def init_params(key, input_len, output_len, dtype=jnp.float32):
    """Deterministic synthetic parameter init (PyTorch-style uniform ranges)."""
    ks = jax.random.split(key, 6)

    def linear(kw, kb, fan_in, fan_out):
        bound = 1.0 / jnp.sqrt(fan_in)
        w = jax.random.uniform(kw, (fan_in, fan_out), dtype, -bound, bound)
        b = jax.random.uniform(kb, (1, fan_out), dtype, -bound, bound)
        return w, b

    w1, b1 = linear(ks[0], ks[1], input_len, HIDDEN1)
    w2, b2 = linear(ks[2], ks[3], HIDDEN1, HIDDEN2)
    w3, b3 = linear(ks[4], ks[5], HIDDEN2, output_len)
    return {"w1": w1, "b1": b1, "w2": w2, "b2": b2, "w3": w3, "b3": b3}


def reference_forward(x, p, compute_dtype=jnp.bfloat16):
    """Pure-JAX reference with the same bf16-operand / f32-accumulate math."""
    cd = compute_dtype
    h1 = jnp.maximum(
        jnp.dot(x.astype(cd), p["w1"].astype(cd),
                preferred_element_type=jnp.float32) + p["b1"], 0.0)
    h2 = jnp.maximum(
        jnp.dot(h1.astype(cd), p["w2"].astype(cd),
                preferred_element_type=jnp.float32) + p["b2"], 0.0)
    return jnp.dot(h2.astype(cd), p["w3"].astype(cd),
                   preferred_element_type=jnp.float32) + p["b3"]


if __name__ == "__main__":
    key = jax.random.PRNGKey(0)
    k_x, k_p = jax.random.split(key)

    batch = 8
    input_len = 32
    output_len = 16

    x = jax.random.normal(k_x, (batch, input_len), jnp.float32)
    params = init_params(k_p, input_len, output_len)
    prepared = prepare_params(params)          # one-time cast, outside the jit

    fwd = jax.jit(lambda xx: combiner_network_forward(xx, prepared))
    out = jax.block_until_ready(fwd(x))

    ref = reference_forward(x, params)
    assert out.shape == (batch, output_len), out.shape
    assert jnp.allclose(out, ref, atol=5e-3, rtol=5e-3), "mismatch vs reference"

    print("KERNEL_OK")
</pallas_src>

<mosaic_0001>
module attributes {stable_mosaic.version = 11 : i64} {
  func.func @_mlp_kernel(%arg0: i32, %arg1: memref<8x32xf32, #tpu.memory_space<vmem>>, %arg2: memref<32x512xbf16, #tpu.memory_space<vmem>>, %arg3: memref<1x512xf32, #tpu.memory_space<vmem>>, %arg4: memref<512x256xbf16, #tpu.memory_space<vmem>>, %arg5: memref<1x256xf32, #tpu.memory_space<vmem>>, %arg6: memref<256x16xbf16, #tpu.memory_space<vmem>>, %arg7: memref<1x16xf32, #tpu.memory_space<vmem>>, %arg8: memref<8x16xf32, #tpu.memory_space<vmem>>) attributes {dimension_semantics = [#tpu.dimension_semantics<parallel>], iteration_bounds = array<i64: 1>, scalar_prefetch = 0 : i64, scratch_operands = 0 : i64, tpu.core_type = #tpu.core_type<tc>, window_params = [{pipeline_mode = #tpu.pipeline_mode<synchronous>, transform_indices = @transform_0, window_bounds = array<i64: 8, 32>}, {pipeline_mode = #tpu.pipeline_mode<synchronous>, transform_indices = @transform_1, window_bounds = array<i64: 32, 512>}, {pipeline_mode = #tpu.pipeline_mode<synchronous>, transform_indices = @transform_2, window_bounds = array<i64: 1, 512>}, {pipeline_mode = #tpu.pipeline_mode<synchronous>, transform_indices = @transform_3, window_bounds = array<i64: 512, 256>}, {pipeline_mode = #tpu.pipeline_mode<synchronous>, transform_indices = @transform_4, window_bounds = array<i64: 1, 256>}, {pipeline_mode = #tpu.pipeline_mode<synchronous>, transform_indices = @transform_5, window_bounds = array<i64: 256, 16>}, {pipeline_mode = #tpu.pipeline_mode<synchronous>, transform_indices = @transform_6, window_bounds = array<i64: 1, 16>}, {transform_indices = @transform_7, window_bounds = array<i64: 8, 16>}]} {
    %c0 = arith.constant 0 : index
    %c0_0 = arith.constant 0 : index
    %0 = vector.load %arg1[%c0, %c0_0] : memref<8x32xf32, #tpu.memory_space<vmem>>, vector<8x32xf32>
    %1 = arith.truncf %0 : vector<8x32xf32> to vector<8x32xbf16>
    %c0_1 = arith.constant 0 : index
    %c0_2 = arith.constant 0 : index
    %2 = vector.load %arg2[%c0_1, %c0_2] : memref<32x512xbf16, #tpu.memory_space<vmem>>, vector<32x512xbf16>
    %cst = arith.constant dense<0.000000e+00> : vector<8x512xf32>
    %3 = tpu.matmul %1, %2, %cst {dimension_numbers = #tpu.dot_dimension_numbers<[1], [0], [0], [1], [0, 0, 1, 1], [], []>} : vector<8x32xbf16>, vector<32x512xbf16>, vector<8x512xf32> -> vector<8x512xf32>
    %c0_3 = arith.constant 0 : index
    %c0_4 = arith.constant 0 : index
    %4 = vector.load %arg3[%c0_3, %c0_4] : memref<1x512xf32, #tpu.memory_space<vmem>>, vector<1x512xf32>
    %5 = vector.broadcast %4 : vector<1x512xf32> to vector<8x512xf32>
    %6 = arith.addf %3, %5 : vector<8x512xf32>
    %cst_5 = arith.constant 0.000000e+00 : f32
    %7 = vector.broadcast %cst_5 : f32 to vector<8x512xf32>
    %8 = arith.maximumf %6, %7 : vector<8x512xf32>
    %9 = arith.truncf %8 : vector<8x512xf32> to vector<8x512xbf16>
    %c0_6 = arith.constant 0 : index
    %c0_7 = arith.constant 0 : index
    %10 = vector.load %arg4[%c0_6, %c0_7] : memref<512x256xbf16, #tpu.memory_space<vmem>>, vector<512x256xbf16>
    %cst_8 = arith.constant dense<0.000000e+00> : vector<8x256xf32>
    %11 = tpu.matmul %9, %10, %cst_8 {dimension_numbers = #tpu.dot_dimension_numbers<[1], [0], [0], [1], [0, 0, 1, 1], [], []>} : vector<8x512xbf16>, vector<512x256xbf16>, vector<8x256xf32> -> vector<8x256xf32>
    %c0_9 = arith.constant 0 : index
    %c0_10 = arith.constant 0 : index
    %12 = vector.load %arg5[%c0_9, %c0_10] : memref<1x256xf32, #tpu.memory_space<vmem>>, vector<1x256xf32>
    %13 = vector.broadcast %12 : vector<1x256xf32> to vector<8x256xf32>
    %14 = arith.addf %11, %13 : vector<8x256xf32>
    %cst_11 = arith.constant 0.000000e+00 : f32
    %15 = vector.broadcast %cst_11 : f32 to vector<8x256xf32>
    %16 = arith.maximumf %14, %15 : vector<8x256xf32>
    %17 = arith.truncf %16 : vector<8x256xf32> to vector<8x256xbf16>
    %c0_12 = arith.constant 0 : index
    %c0_13 = arith.constant 0 : index
    %18 = vector.load %arg6[%c0_12, %c0_13] : memref<256x16xbf16, #tpu.memory_space<vmem>>, vector<256x16xbf16>
    %cst_14 = arith.constant dense<0.000000e+00> : vector<8x16xf32>
    %19 = tpu.matmul %17, %18, %cst_14 {dimension_numbers = #tpu.dot_dimension_numbers<[1], [0], [0], [1], [0, 0, 1, 1], [], []>} : vector<8x256xbf16>, vector<256x16xbf16>, vector<8x16xf32> -> vector<8x16xf32>
    %c0_15 = arith.constant 0 : index
    %c0_16 = arith.constant 0 : index
    %20 = vector.load %arg7[%c0_15, %c0_16] : memref<1x16xf32, #tpu.memory_space<vmem>>, vector<1x16xf32>
    %21 = vector.broadcast %20 : vector<1x16xf32> to vector<8x16xf32>
    %22 = arith.addf %19, %21 : vector<8x16xf32>
    %c0_17 = arith.constant 0 : index
    %c0_18 = arith.constant 0 : index
    %23 = vector.load %arg8[%c0_17, %c0_18] : memref<8x16xf32, #tpu.memory_space<vmem>>, vector<8x16xf32>
    tpu.vector_store %arg8[%c0_17, %c0_18], %22 {strides = array<i32>} : memref<8x16xf32, #tpu.memory_space<vmem>>, vector<8x16xf32>,
    return
  }
  func.func @transform_0(%arg0: i32) -> (i32, i32) {
    %c0_i32 = arith.constant 0 : i32
    %c0_i32_0 = arith.constant 0 : i32
    return %arg0, %c0_i32 : i32, i32
  }
  func.func @transform_1(%arg0: i32) -> (i32, i32) {
    %c0_i32 = arith.constant 0 : i32
    %c0_i32_0 = arith.constant 0 : i32
    %c0_i32_1 = arith.constant 0 : i32
    return %c0_i32, %c0_i32_0 : i32, i32
  }
  func.func @transform_2(%arg0: i32) -> (i32, i32) {
    %c0_i32 = arith.constant 0 : i32
    %c0_i32_0 = arith.constant 0 : i32
    %c0_i32_1 = arith.constant 0 : i32
    return %c0_i32, %c0_i32_0 : i32, i32
  }
  func.func @transform_3(%arg0: i32) -> (i32, i32) {
    %c0_i32 = arith.constant 0 : i32
    %c0_i32_0 = arith.constant 0 : i32
    %c0_i32_1 = arith.constant 0 : i32
    return %c0_i32, %c0_i32_0 : i32, i32
  }
  func.func @transform_4(%arg0: i32) -> (i32, i32) {
    %c0_i32 = arith.constant 0 : i32
    %c0_i32_0 = arith.constant 0 : i32
    %c0_i32_1 = arith.constant 0 : i32
    return %c0_i32, %c0_i32_0 : i32, i32
  }
  func.func @transform_5(%arg0: i32) -> (i32, i32) {
    %c0_i32 = arith.constant 0 : i32
    %c0_i32_0 = arith.constant 0 : i32
    %c0_i32_1 = arith.constant 0 : i32
    return %c0_i32, %c0_i32_0 : i32, i32
  }
  func.func @transform_6(%arg0: i32) -> (i32, i32) {
    %c0_i32 = arith.constant 0 : i32
    %c0_i32_0 = arith.constant 0 : i32
    %c0_i32_1 = arith.constant 0 : i32
    return %c0_i32, %c0_i32_0 : i32, i32
  }
  func.func @transform_7(%arg0: i32) -> (i32, i32) {
    %c0_i32 = arith.constant 0 : i32
    %c0_i32_0 = arith.constant 0 : i32
    return %arg0, %c0_i32 : i32, i32
  }
}

</mosaic_0001>

<llo_original>
// kernel: _lambda_.1
$region0: #{_lambda_.1}
  #allocation0 [shape = 'u32[]', space=smem, size = 0x4, offset = 0x4, fixed_abs, tag = 'smem constant byte address 0x4 - core index']
  #allocation1 [shape = 'u32[72,128]{1,0:T(1,128)}', space=vmem, size = 0x9000, scoped, tag = 'internal scratch']
  %s0 = inlined_call_operand.hbm [shape: f32[8,32], index: 0, kind: input, shape index: {}]
  %s1 = inlined_call_operand.hbm [shape: bf16[32,512], index: 1, kind: input, shape index: {}]
  %s2 = inlined_call_operand.hbm [shape: f32[1,512], index: 2, kind: input, shape index: {}]
  %s3 = inlined_call_operand.hbm [shape: bf16[512,256], index: 3, kind: input, shape index: {}]
  %s4 = inlined_call_operand.vmem [shape: f32[1,256], index: 4, kind: input, shape index: {}]
  %s5 = inlined_call_operand.hbm [shape: bf16[256,16], index: 5, kind: input, shape index: {}]
  %s6 = inlined_call_operand.vmem [shape: f32[1,16], index: 6, kind: input, shape index: {}]
  %s7 = inlined_call_operand.hbm [shape: f32[8,16], index: 7, kind: output, shape index: {}]
  %s8 = sld [smem:[#allocation0]]
  $region58: #{_lambda_.1} parent=0
    _
  %s10 = ssub.s32 1, %s8
  %s11 = scalar_select 0, %s10, %s8
  $region1: #{_lambda_.1} parent=0
    #allocation2 [shape = 'u8[4096]{0}', space=vmem, size = 0x1000, scoped, tag = 'input window, operand 0, single buffered']
    #allocation3 [shape = 's32[1]{0}', space=sflag, size = 0x4, scoped, tag = 'scoped memory for _lambda_.1']
    #allocation4 [shape = 's32[1]{0}', space=sflag, size = 0x4, scoped, tag = 'scoped memory for _lambda_.1']
    #allocation5 [shape = 'u8[32768]{0}', space=vmem, size = 0x8000, scoped, tag = 'input window, operand 1, single buffered']
    #allocation6 [shape = 's32[1]{0}', space=sflag, size = 0x4, scoped, tag = 'scoped memory for _lambda_.1']
    #allocation7 [shape = 'u8[2048]{0}', space=vmem, size = 0x800, scoped, tag = 'input window, operand 2, single buffered']
    #allocation8 [shape = 'u8[262144]{0}', space=vmem, size = 0x40000, scoped, tag = 'input window, operand 3, single buffered']
    #allocation9 [shape = 's32[1]{0}', space=sflag, size = 0x4, scoped, tag = 'scoped memory for _lambda_.1']
    #allocation10 [shape = 'u8[65536]{0}', space=vmem, size = 0x10000, scoped, tag = 'input window, operand 5, single buffered']
    #allocation11 [shape = 'u8[4096]{0}', space=vmem, size = 0x1000, scoped, tag = 'output window, operand 0, single buffered']
    %12 = vsyncpa [#allocation3], 0
    %13 = vsyncpa [#allocation6], 0
    %14 = vsyncpa [#allocation9], 0
    %15 = vsyncpa [#allocation4], 0
    // Predicated region
    $region2: #{_lambda_.1} parent=1 // pred_check
      _
    $region3: #{_lambda_.1} parent=1 // pred_check_branch
      %17 = sbr.rel (0) target = $region5
    $region4: #{_lambda_.1} parent=1 // pred_region
      %19 = vsyncadd [#allocation3], 0
      %s21 = sshll.u32 %s0, 4
      %s22 = int_to_ptr.hbm [resolvable:$true] %s21
      %s23 = sshll.u32 [#allocation2], 4
      %s24 = int_to_ptr.vmem [resolvable:$true] %s23
      %26 = dma.hbm_to_vmem [thread:$0]  %s22, 128, %s24, [#allocation3]
    $region5: #{_lambda_.1} parent=1 // pred_fallthru
      _
    // Predicated region
    $region6: #{_lambda_.1} parent=1 // pred_check
      _
    $region7: #{_lambda_.1} parent=1 // pred_check_branch
      %28 = sbr.rel (0) target = $region9
    $region8: #{_lambda_.1} parent=1 // pred_region
      %30 = vsyncadd [#allocation6], 0
      %s31 = sshll.u32 %s1, 4
      %s32 = int_to_ptr.hbm [resolvable:$true] %s31
      %s33 = sshll.u32 [#allocation5], 4
      %s34 = int_to_ptr.vmem [resolvable:$true] %s33
      %39 = dma.hbm_to_vmem [thread:$0]  %s32, 1024, %s34, [#allocation6], 256, 256, 16
    $region9: #{_lambda_.1} parent=1 // pred_fallthru
      _
    // Predicated region
    $region10: #{_lambda_.1} parent=1 // pred_check
      _
    $region11: #{_lambda_.1} parent=1 // pred_check_branch
      %41 = sbr.rel (0) target = $region13
    $region12: #{_lambda_.1} parent=1 // pred_region
      %43 = vsyncadd [#allocation6], 0
      %s45 = sshll.u32 %s2, 4
      %s46 = int_to_ptr.hbm [resolvable:$true] %s45
      %s47 = sshll.u32 [#allocation7], 4
      %s48 = int_to_ptr.vmem [resolvable:$true] %s47
      %50 = dma.hbm_to_vmem [thread:$0]  %s46, 64, %s48, [#allocation6]
    $region13: #{_lambda_.1} parent=1 // pred_fallthru
      _
    // Predicated region
    $region14: #{_lambda_.1} parent=1 // pred_check
      _
    $region15: #{_lambda_.1} parent=1 // pred_check_branch
      %52 = sbr.rel (0) target = $region17
    $region16: #{_lambda_.1} parent=1 // pred_region
      %54 = vsyncadd [#allocation9], 0
      %s55 = sshll.u32 %s3, 4
      %s56 = int_to_ptr.hbm [resolvable:$true] %s55
      %s57 = sshll.u32 [#allocation8], 4
      %s58 = int_to_ptr.vmem [resolvable:$true] %s57
      %63 = dma.hbm_to_vmem [thread:$0]  %s56, 8192, %s58, [#allocation9], 128, 128, 8
    $region17: #{_lambda_.1} parent=1 // pred_fallthru
      _
    // Predicated region
    $region18: #{_lambda_.1} parent=1 // pred_check
      _
    $region19: #{_lambda_.1} parent=1 // pred_check_branch
      %65 = sbr.rel (0) target = $region21
    $region20: #{_lambda_.1} parent=1 // pred_region
      _
    $region21: #{_lambda_.1} parent=1 // pred_fallthru
      _
    // Predicated region
    $region22: #{_lambda_.1} parent=1 // pred_check
      _
    $region23: #{_lambda_.1} parent=1 // pred_check_branch
      %67 = sbr.rel (0) target = $region25
    $region24: #{_lambda_.1} parent=1 // pred_region
      %69 = vsyncadd [#allocation9], 0
      %s70 = sshll.u32 %s5, 4
      %s71 = int_to_ptr.hbm [resolvable:$true] %s70
      %s72 = sshll.u32 [#allocation10], 4
      %s73 = int_to_ptr.vmem [resolvable:$true] %s72
      %78 = dma.hbm_to_vmem [thread:$0]  %s71, 2048, %s73, [#allocation9], 64, 64, 4
    $region25: #{_lambda_.1} parent=1 // pred_fallthru
      _
    // Predicated region
    $region26: #{_lambda_.1} parent=1 // pred_check
      _
    $region27: #{_lambda_.1} parent=1 // pred_check_branch
      %80 = sbr.rel (0) target = $region29
    $region28: #{_lambda_.1} parent=1 // pred_region
      _
    $region29: #{_lambda_.1} parent=1 // pred_fallthru
      _
    // Predicated region
    $region30: #{_lambda_.1} parent=1 // pred_check
      _
    $region31: #{_lambda_.1} parent=1 // pred_check_branch
      %82 = sbr.rel (0) target = $region33
    $region32: #{_lambda_.1} parent=1 // pred_region
      %84 = dma.done [#allocation3], 128
    $region33: #{_lambda_.1} parent=1 // pred_fallthru
      _
    // Predicated region
    $region34: #{_lambda_.1} parent=1 // pred_check
      _
    $region35: #{_lambda_.1} parent=1 // pred_check_branch
      %86 = sbr.rel (0) target = $region37
    $region36: #{_lambda_.1} parent=1 // pred_region
      %88 = dma.done [#allocation6], 1024
    $region37: #{_lambda_.1} parent=1 // pred_fallthru
      _
    // Predicated region
    $region38: #{_lambda_.1} parent=1 // pred_check
      _
    $region39: #{_lambda_.1} parent=1 // pred_check_branch
      %90 = sbr.rel (0) target = $region41
    $region40: #{_lambda_.1} parent=1 // pred_region
      %92 = dma.done [#allocation6], 64
    $region41: #{_lambda_.1} parent=1 // pred_fallthru
      _
    // Predicated region
    $region42: #{_lambda_.1} parent=1 // pred_check
      _
    $region43: #{_lambda_.1} parent=1 // pred_check_branch
      %94 = sbr.rel (0) target = $region45
    $region44: #{_lambda_.1} parent=1 // pred_region
      %96 = dma.done [#allocation9], 8192
    $region45: #{_lambda_.1} parent=1 // pred_fallthru
      _
    // Predicated region
    $region46: #{_lambda_.1} parent=1 // pred_check
      _
    $region47: #{_lambda_.1} parent=1 // pred_check_branch
      %98 = sbr.rel (0) target = $region49
    $region48: #{_lambda_.1} parent=1 // pred_region
      %100 = dma.done [#allocation9], 2048
    $region49: #{_lambda_.1} parent=1 // pred_fallthru
      _
    %v102 = vld [vmem:[#allocation2] sm:$0xff]
    %v103 = vpack.c.bf16 %v102, %v102
    %v104 = vld [vmem:[#allocation5] sm:$0xff]
    %v105 = vld [vmem:[#allocation5 + $0x8] sm:$0xff]
    %v106 = vld [vmem:[#allocation5 + $0x10] sm:$0xff]
    %v107 = vld [vmem:[#allocation5 + $0x18] sm:$0xff]
    %v108 = vld [vmem:[#allocation5 + $0x20] sm:$0xff]
    %v109 = vld [vmem:[#allocation5 + $0x28] sm:$0xff]
    %v110 = vld [vmem:[#allocation5 + $0x30] sm:$0xff]
    %v111 = vld [vmem:[#allocation5 + $0x38] sm:$0xff]
    %v112 = vld [vmem:[#allocation7] sm:$0xf]
    %v114 = vperm.slane %v112, 0
    %v115 = vperm.slane %v112, 1
    %v116 = vperm.slane %v112, 2
    %v117 = vperm.slane %v112, 3
    %v130 = vunpack.c.l.b16 %v104
    %v131 = vunpack.c.h.b16 %v104
    %v132 = vunpack.c.l.b16 %v105
    %v133 = vunpack.c.h.b16 %v105
    %v134 = vunpack.c.l.b16 %v106
    %v135 = vunpack.c.h.b16 %v106
    %v136 = vunpack.c.l.b16 %v107
    %v137 = vunpack.c.h.b16 %v107
    %v138 = vunpack.c.l.b16 %v108
    %v139 = vunpack.c.h.b16 %v108
    %v140 = vunpack.c.l.b16 %v109
    %v141 = vunpack.c.h.b16 %v109
    %v142 = vunpack.c.l.b16 %v110
    %v143 = vunpack.c.h.b16 %v110
    %v144 = vunpack.c.l.b16 %v111
    %v145 = vunpack.c.h.b16 %v111
    %v146 = vpack.c.b16 %v134, %v130
    %v147 = vpack.c.b16 %v135, %v131
    %v148 = vpack.c.b16 %v136, %v132
    %v149 = vpack.c.b16 %v137, %v133
    %v150 = vpack.c.b16 %v142, %v138
    %v151 = vpack.c.b16 %v143, %v139
    %v152 = vpack.c.b16 %v144, %v140
    %v153 = vpack.c.b16 %v145, %v141
    %vm162 = vcmask 261120
    %v164 = vsel %vm162, %v103, 0
    %166 = vmatpush.bf16.msra.mxu0 0
    %167 = vmatpush.bf16.msra.mxu0 0
    %168 = vmatpush.bf16.msra.mxu0 0
    %169 = vmatpush.bf16.msra.mxu0 0
    %170 = vmatpush.bf16.msra.mxu0 0
    %171 = vmatpush.bf16.msra.mxu0 0
    %172 = vmatpush.bf16.msra.mxu0 %v150
    %173 = vmatpush.bf16.msra.mxu0 %v146
    %174 = vmatmul.bf16.gmra.mxu0 %v164
    %v175 = vpop.f32.mrf.mxu0
    %v176 = vadd.f32 %v114, %v175
    %v177 = vpop.f32.mrf.mxu0
    %178 = vdwg.mxu0
    %179 = vmatpush.bf16.msra.mxu0 0
    %180 = vmatpush.bf16.msra.mxu0 0
    %181 = vmatpush.bf16.msra.mxu0 0
    %182 = vmatpush.bf16.msra.mxu0 0
    %183 = vmatpush.bf16.msra.mxu0 0
    %184 = vmatpush.bf16.msra.mxu0 0
    %185 = vmatpush.bf16.msra.mxu0 %v151
    %186 = vmatpush.bf16.msra.mxu0 %v147
    %187 = vmatmul.bf16.gmra.mxu0 %v164
    %v188 = vpop.f32.mrf.mxu0
    %v189 = vadd.f32 %v115, %v188
    %v190 = vpop.f32.mrf.mxu0
    %191 = vdwg.mxu0
    %192 = vmatpush.bf16.msra.mxu0 0
    %193 = vmatpush.bf16.msra.mxu0 0
    %194 = vmatpush.bf16.msra.mxu0 0
    %195 = vmatpush.bf16.msra.mxu0 0
    %196 = vmatpush.bf16.msra.mxu0 0
    %197 = vmatpush.bf16.msra.mxu0 0
    %198 = vmatpush.bf16.msra.mxu0 %v152
    %199 = vmatpush.bf16.msra.mxu0 %v148
    %200 = vmatmul.bf16.gmra.mxu0 %v164
    %v201 = vpop.f32.mrf.mxu0
    %v202 = vadd.f32 %v116, %v201
    %v203 = vpop.f32.mrf.mxu0
    %204 = vdwg.mxu0
    %205 = vmatpush.bf16.msra.mxu0 0
    %206 = vmatpush.bf16.msra.mxu0 0
    %207 = vmatpush.bf16.msra.mxu0 0
    %208 = vmatpush.bf16.msra.mxu0 0
    %209 = vmatpush.bf16.msra.mxu0 0
    %210 = vmatpush.bf16.msra.mxu0 0
    %211 = vmatpush.bf16.msra.mxu0 %v153
    %212 = vmatpush.bf16.msra.mxu0 %v149
    %213 = vmatmul.bf16.gmra.mxu0 %v164
    %v214 = vpop.f32.mrf.mxu0
    %v215 = vadd.f32 %v117, %v214
    %v216 = vpop.f32.mrf.mxu0
    %217 = vdwg.mxu0
    %v218 = vmax.f32 %v176, 0.0
    %v219 = vmax.f32 %v189, 0.0
    %v220 = vmax.f32 %v202, 0.0
    %v221 = vmax.f32 %v215, 0.0
    %v222 = vpack.c.bf16 %v218, %v218
    %v223 = vpack.c.bf16 %v219, %v219
    %v224 = vpack.c.bf16 %v220, %v220
    %v225 = vpack.c.bf16 %v221, %v221
    %v226 = vld [vmem:[#allocation8] sm:$0xff]
    %v227 = vld [vmem:[#allocation8 + $0x8] sm:$0xff]
    %v228 = vld [vmem:[#allocation8 + $0x10] sm:$0xff]
    %v229 = vld [vmem:[#allocation8 + $0x18] sm:$0xff]
    %v230 = vld [vmem:[#allocation8 + $0x20] sm:$0xff]
    %v231 = vld [vmem:[#allocation8 + $0x28] sm:$0xff]
    %v232 = vld [vmem:[#allocation8 + $0x30] sm:$0xff]
    %v233 = vld [vmem:[#allocation8 + $0x38] sm:$0xff]
    %v234 = vld [vmem:[#allocation8 + $0x40] sm:$0xff]
    %v235 = vld [vmem:[#allocation8 + $0x48] sm:$0xff]
    %v236 = vld [vmem:[#allocation8 + $0x50] sm:$0xff]
    %v237 = vld [vmem:[#allocation8 + $0x58] sm:$0xff]
    %v238 = vld [vmem:[#allocation8 + $0x60] sm:$0xff]
    %v239 = vld [vmem:[#allocation8 + $0x68] sm:$0xff]
    %v240 = vld [vmem:[#allocation8 + $0x70] sm:$0xff]
    %v241 = vld [vmem:[#allocation8 + $0x78] sm:$0xff]
    %v242 = vld [vmem:[#allocation8 + $0x80] sm:$0xff]
    %v243 = vld [vmem:[#allocation8 + $0x88] sm:$0xff]
    %v244 = vld [vmem:[#allocation8 + $0x90] sm:$0xff]
    %v245 = vld [vmem:[#allocation8 + $0x98] sm:$0xff]
    %v246 = vld [vmem:[#allocation8 + $0xa0] sm:$0xff]
    %v247 = vld [vmem:[#allocation8 + $0xa8] sm:$0xff]
    %v248 = vld [vmem:[#allocation8 + $0xb0] sm:$0xff]
    %v249 = vld [vmem:[#allocation8 + $0xb8] sm:$0xff]
    %v250 = vld [vmem:[#allocation8 + $0xc0] sm:$0xff]
    %v251 = vld [vmem:[#allocation8 + $0xc8] sm:$0xff]
    %v252 = vld [vmem:[#allocation8 + $0xd0] sm:$0xff]
    %v253 = vld [vmem:[#allocation8 + $0xd8] sm:$0xff]
    %v254 = vld [vmem:[#allocation8 + $0xe0] sm:$0xff]
    %v255 = vld [vmem:[#allocation8 + $0xe8] sm:$0xff]
    %v256 = vld [vmem:[#allocation8 + $0xf0] sm:$0xff]
    %v257 = vld [vmem:[#allocation8 + $0xf8] sm:$0xff]
    %v258 = vld [vmem:[#allocation8 + $0x100] sm:$0xff]
    %v259 = vld [vmem:[#allocation8 + $0x108] sm:$0xff]
    %v260 = vld [vmem:[#allocation8 + $0x110] sm:$0xff]
    %v261 = vld [vmem:[#allocation8 + $0x118] sm:$0xff]
    %v262 = vld [vmem:[#allocation8 + $0x120] sm:$0xff]
    %v263 = vld [vmem:[#allocation8 + $0x128] sm:$0xff]
    %v264 = vld [vmem:[#allocation8 + $0x130] sm:$0xff]
    %v265 = vld [vmem:[#allocation8 + $0x138] sm:$0xff]
    %v266 = vld [vmem:[#allocation8 + $0x140] sm:$0xff]
    %v267 = vld [vmem:[#allocation8 + $0x148] sm:$0xff]
    %v268 = vld [vmem:[#allocation8 + $0x150] sm:$0xff]
    %v269 = vld [vmem:[#allocation8 + $0x158] sm:$0xff]
    %v270 = vld [vmem:[#allocation8 + $0x160] sm:$0xff]
    %v271 = vld [vmem:[#allocation8 + $0x168] sm:$0xff]
    %v272 = vld [vmem:[#allocation8 + $0x170] sm:$0xff]
    %v273 = vld [vmem:[#allocation8 + $0x178] sm:$0xff]
    %v274 = vld [vmem:[#allocation8 + $0x180] sm:$0xff]
    %v275 = vld [vmem:[#allocation8 + $0x188] sm:$0xff]
    %v276 = vld [vmem:[#allocation8 + $0x190] sm:$0xff]
    %v277 = vld [vmem:[#allocation8 + $0x198] sm:$0xff]
    %v278 = vld [vmem:[#allocation8 + $0x1a0] sm:$0xff]
    %v279 = vld [vmem:[#allocation8 + $0x1a8] sm:$0xff]
    %v280 = vld [vmem:[#allocation8 + $0x1b0] sm:$0xff]
    %v281 = vld [vmem:[#allocation8 + $0x1b8] sm:$0xff]
    %v282 = vld [vmem:[#allocation8 + $0x1c0] sm:$0xff]
    %v283 = vld [vmem:[#allocation8 + $0x1c8] sm:$0xff]
    %v284 = vld [vmem:[#allocation8 + $0x1d0] sm:$0xff]
    %v285 = vld [vmem:[#allocation8 + $0x1d8] sm:$0xff]
    %v286 = vld [vmem:[#allocation8 + $0x1e0] sm:$0xff]
    %v287 = vld [vmem:[#allocation8 + $0x1e8] sm:$0xff]
    %v288 = vld [vmem:[#allocation8 + $0x1f0] sm:$0xff]
    %v289 = vld [vmem:[#allocation8 + $0x1f8] sm:$0xff]
    %v290 = vld [vmem:[%s4] sm:$0x3]
    %v292 = vperm.slane %v290, 0
    %v293 = vperm.slane %v290, 1
    %v360 = vunpack.c.l.b16 %v226
    %v361 = vunpack.c.h.b16 %v226
    %v362 = vunpack.c.l.b16 %v227
    %v363 = vunpack.c.h.b16 %v227
    %v364 = vunpack.c.l.b16 %v228
    %v365 = vunpack.c.h.b16 %v228
    %v366 = vunpack.c.l.b16 %v229
    %v367 = vunpack.c.h.b16 %v229
    %v368 = vunpack.c.l.b16 %v230
    %v369 = vunpack.c.h.b16 %v230
    %v370 = vunpack.c.l.b16 %v231
    %v371 = vunpack.c.h.b16 %v231
    %v372 = vunpack.c.l.b16 %v232
    %v373 = vunpack.c.h.b16 %v232
    %v374 = vunpack.c.l.b16 %v233
    %v375 = vunpack.c.h.b16 %v233
    %v376 = vunpack.c.l.b16 %v234
    %v377 = vunpack.c.h.b16 %v234
    %v378 = vunpack.c.l.b16 %v235
    %v379 = vunpack.c.h.b16 %v235
    %v380 = vunpack.c.l.b16 %v236
    %v381 = vunpack.c.h.b16 %v236
    %v382 = vunpack.c.l.b16 %v237
    %v383 = vunpack.c.h.b16 %v237
    %v384 = vunpack.c.l.b16 %v238
    %v385 = vunpack.c.h.b16 %v238
    %v386 = vunpack.c.l.b16 %v239
    %v387 = vunpack.c.h.b16 %v239
    %v388 = vunpack.c.l.b16 %v240
    %v389 = vunpack.c.h.b16 %v240
    %v390 = vunpack.c.l.b16 %v241
    %v391 = vunpack.c.h.b16 %v241
    %v392 = vunpack.c.l.b16 %v242
    %v393 = vunpack.c.h.b16 %v242
    %v394 = vunpack.c.l.b16 %v243
    %v395 = vunpack.c.h.b16 %v243
    %v396 = vunpack.c.l.b16 %v244
    %v397 = vunpack.c.h.b16 %v244
    %v398 = vunpack.c.l.b16 %v245
    %v399 = vunpack.c.h.b16 %v245
    %v400 = vunpack.c.l.b16 %v246
    %v401 = vunpack.c.h.b16 %v246
    %v402 = vunpack.c.l.b16 %v247
    %v403 = vunpack.c.h.b16 %v247
    %v404 = vunpack.c.l.b16 %v248
    %v405 = vunpack.c.h.b16 %v248
    %v406 = vunpack.c.l.b16 %v249
    %v407 = vunpack.c.h.b16 %v249
    %v408 = vunpack.c.l.b16 %v250
    %v409 = vunpack.c.h.b16 %v250
    %v410 = vunpack.c.l.b16 %v251
    %v411 = vunpack.c.h.b16 %v251
    %v412 = vunpack.c.l.b16 %v252
    %v413 = vunpack.c.h.b16 %v252
    %v414 = vunpack.c.l.b16 %v253
    %v415 = vunpack.c.h.b16 %v253
    %v416 = vunpack.c.l.b16 %v254
    %v417 = vunpack.c.h.b16 %v254
    %v418 = vunpack.c.l.b16 %v255
    %v419 = vunpack.c.h.b16 %v255
    %v420 = vunpack.c.l.b16 %v256
    %v421 = vunpack.c.h.b16 %v256
    %v422 = vunpack.c.l.b16 %v257
    %v423 = vunpack.c.h.b16 %v257
    %v424 = vunpack.c.l.b16 %v258
    %v425 = vunpack.c.h.b16 %v258
    %v426 = vunpack.c.l.b16 %v259
    %v427 = vunpack.c.h.b16 %v259
    %v428 = vunpack.c.l.b16 %v260
    %v429 = vunpack.c.h.b16 %v260
    %v430 = vunpack.c.l.b16 %v261
    %v431 = vunpack.c.h.b16 %v261
    %v432 = vunpack.c.l.b16 %v262
    %v433 = vunpack.c.h.b16 %v262
    %v434 = vunpack.c.l.b16 %v263
    %v435 = vunpack.c.h.b16 %v263
    %v436 = vunpack.c.l.b16 %v264
    %v437 = vunpack.c.h.b16 %v264
    %v438 = vunpack.c.l.b16 %v265
    %v439 = vunpack.c.h.b16 %v265
    %v440 = vunpack.c.l.b16 %v266
    %v441 = vunpack.c.h.b16 %v266
    %v442 = vunpack.c.l.b16 %v267
    %v443 = vunpack.c.h.b16 %v267
    %v444 = vunpack.c.l.b16 %v268
    %v445 = vunpack.c.h.b16 %v268
    %v446 = vunpack.c.l.b16 %v269
    %v447 = vunpack.c.h.b16 %v269
    %v448 = vunpack.c.l.b16 %v270
    %v449 = vunpack.c.h.b16 %v270
    %v450 = vunpack.c.l.b16 %v271
    %v451 = vunpack.c.h.b16 %v271
    %v452 = vunpack.c.l.b16 %v272
    %v453 = vunpack.c.h.b16 %v272
    %v454 = vunpack.c.l.b16 %v273
    %v455 = vunpack.c.h.b16 %v273
    %v456 = vunpack.c.l.b16 %v274
    %v457 = vunpack.c.h.b16 %v274
    %v458 = vunpack.c.l.b16 %v275
    %v459 = vunpack.c.h.b16 %v275
    %v460 = vunpack.c.l.b16 %v276
    %v461 = vunpack.c.h.b16 %v276
    %v462 = vunpack.c.l.b16 %v277
    %v463 = vunpack.c.h.b16 %v277
    %v464 = vunpack.c.l.b16 %v278
    %v465 = vunpack.c.h.b16 %v278
    %v466 = vunpack.c.l.b16 %v279
    %v467 = vunpack.c.h.b16 %v279
    %v468 = vunpack.c.l.b16 %v280
    %v469 = vunpack.c.h.b16 %v280
    %v470 = vunpack.c.l.b16 %v281
    %v471 = vunpack.c.h.b16 %v281
    %v472 = vunpack.c.l.b16 %v282
    %v473 = vunpack.c.h.b16 %v282
    %v474 = vunpack.c.l.b16 %v283
    %v475 = vunpack.c.h.b16 %v283
    %v476 = vunpack.c.l.b16 %v284
    %v477 = vunpack.c.h.b16 %v284
    %v478 = vunpack.c.l.b16 %v285
    %v479 = vunpack.c.h.b16 %v285
    %v480 = vunpack.c.l.b16 %v286
    %v481 = vunpack.c.h.b16 %v286
    %v482 = vunpack.c.l.b16 %v287
    %v483 = vunpack.c.h.b16 %v287
    %v484 = vunpack.c.l.b16 %v288
    %v485 = vunpack.c.h.b16 %v288
    %v486 = vunpack.c.l.b16 %v289
    %v487 = vunpack.c.h.b16 %v289
    %v488 = vpack.c.b16 %v362, %v360
    %v489 = vpack.c.b16 %v363, %v361
    %v490 = vpack.c.b16 %v366, %v364
    %v491 = vpack.c.b16 %v367, %v365
    %v492 = vpack.c.b16 %v370, %v368
    %v493 = vpack.c.b16 %v371, %v369
    %v494 = vpack.c.b16 %v374, %v372
    %v495 = vpack.c.b16 %v375, %v373
    %v496 = vpack.c.b16 %v378, %v376
    %v497 = vpack.c.b16 %v379, %v377
    %v498 = vpack.c.b16 %v382, %v380
    %v499 = vpack.c.b16 %v383, %v381
    %v500 = vpack.c.b16 %v386, %v384
    %v501 = vpack.c.b16 %v387, %v385
    %v502 = vpack.c.b16 %v390, %v388
    %v503 = vpack.c.b16 %v391, %v389
    %v504 = vpack.c.b16 %v394, %v392
    %v505 = vpack.c.b16 %v395, %v393
    %v506 = vpack.c.b16 %v398, %v396
    %v507 = vpack.c.b16 %v399, %v397
    %v508 = vpack.c.b16 %v402, %v400
    %v509 = vpack.c.b16 %v403, %v401
    %v510 = vpack.c.b16 %v406, %v404
    %v511 = vpack.c.b16 %v407, %v405
    %v512 = vpack.c.b16 %v410, %v408
    %v513 = vpack.c.b16 %v411, %v409
    %v514 = vpack.c.b16 %v414, %v412
    %v515 = vpack.c.b16 %v415, %v413
    %v516 = vpack.c.b16 %v418, %v416
    %v517 = vpack.c.b16 %v419, %v417
    %v518 = vpack.c.b16 %v422, %v420
    %v519 = vpack.c.b16 %v423, %v421
    %v520 = vpack.c.b16 %v426, %v424
    %v521 = vpack.c.b16 %v427, %v425
    %v522 = vpack.c.b16 %v430, %v428
    %v523 = vpack.c.b16 %v431, %v429
    %v524 = vpack.c.b16 %v434, %v432
    %v525 = vpack.c.b16 %v435, %v433
    %v526 = vpack.c.b16 %v438, %v436
    %v527 = vpack.c.b16 %v439, %v437
    %v528 = vpack.c.b16 %v442, %v440
    %v529 = vpack.c.b16 %v443, %v441
    %v530 = vpack.c.b16 %v446, %v444
    %v531 = vpack.c.b16 %v447, %v445
    %v532 = vpack.c.b16 %v450, %v448
    %v533 = vpack.c.b16 %v451, %v449
    %v534 = vpack.c.b16 %v454, %v452
    %v535 = vpack.c.b16 %v455, %v453
    %v536 = vpack.c.b16 %v458, %v456
    %v537 = vpack.c.b16 %v459, %v457
    %v538 = vpack.c.b16 %v462, %v460
    %v539 = vpack.c.b16 %v463, %v461
    %v540 = vpack.c.b16 %v466, %v464
    %v541 = vpack.c.b16 %v467, %v465
    %v542 = vpack.c.b16 %v470, %v468
    %v543 = vpack.c.b16 %v471, %v469
    %v544 = vpack.c.b16 %v474, %v472
    %v545 = vpack.c.b16 %v475, %v473
    %v546 = vpack.c.b16 %v478, %v476
    %v547 = vpack.c.b16 %v479, %v477
    %v548 = vpack.c.b16 %v482, %v480
    %v549 = vpack.c.b16 %v483, %v481
    %v550 = vpack.c.b16 %v486, %v484
    %v551 = vpack.c.b16 %v487, %v485
    %616 = vmatpush.bf16.msra.mxu0 %v502
    %617 = vmatpush.bf16.msra.mxu0 %v500
    %618 = vmatpush.bf16.msra.mxu0 %v498
    %619 = vmatpush.bf16.msra.mxu0 %v496
    %620 = vmatpush.bf16.msra.mxu0 %v494
    %621 = vmatpush.bf16.msra.mxu0 %v492
    %622 = vmatpush.bf16.msra.mxu0 %v490
    %623 = vmatpush.bf16.msra.mxu0 %v488
    %624 = vmatmul.bf16.gmra.mxu0 %v222
    %v625 = vpop.f32.mrf.mxu0
    %v626 = vadd.f32 %v292, %v625
    %v627 = vpop.f32.mrf.mxu0
    %628 = vdwg.mxu0
    %629 = vmatpush.bf16.msra.mxu0 %v518
    %630 = vmatpush.bf16.msra.mxu0 %v516
    %631 = vmatpush.bf16.msra.mxu0 %v514
    %632 = vmatpush.bf16.msra.mxu0 %v512
    %633 = vmatpush.bf16.msra.mxu0 %v510
    %634 = vmatpush.bf16.msra.mxu0 %v508
    %635 = vmatpush.bf16.msra.mxu0 %v506
    %636 = vmatpush.bf16.msra.mxu0 %v504
    %637 = vmatmul.bf16.gmra.mxu0 %v223
    %v638 = vpop.f32.mrf.mxu0
    %v639 = vadd.f32 %v626, %v638
    %v640 = vpop.f32.mrf.mxu0
    %641 = vdwg.mxu0
    %642 = vmatpush.bf16.msra.mxu0 %v534
    %643 = vmatpush.bf16.msra.mxu0 %v532
    %644 = vmatpush.bf16.msra.mxu0 %v530
    %645 = vmatpush.bf16.msra.mxu0 %v528
    %646 = vmatpush.bf16.msra.mxu0 %v526
    %647 = vmatpush.bf16.msra.mxu0 %v524
    %648 = vmatpush.bf16.msra.mxu0 %v522
    %649 = vmatpush.bf16.msra.mxu0 %v520
    %650 = vmatmul.bf16.gmra.mxu0 %v224
    %v651 = vpop.f32.mrf.mxu0
    %v652 = vadd.f32 %v639, %v651
    %v653 = vpop.f32.mrf.mxu0
    %654 = vdwg.mxu0
    %655 = vmatpush.bf16.msra.mxu0 %v550
    %656 = vmatpush.bf16.msra.mxu0 %v548
    %657 = vmatpush.bf16.msra.mxu0 %v546
    %658 = vmatpush.bf16.msra.mxu0 %v544
    %659 = vmatpush.bf16.msra.mxu0 %v542
    %660 = vmatpush.bf16.msra.mxu0 %v540
    %661 = vmatpush.bf16.msra.mxu0 %v538
    %662 = vmatpush.bf16.msra.mxu0 %v536
    %663 = vmatmul.bf16.gmra.mxu0 %v225
    %v664 = vpop.f32.mrf.mxu0
    %v665 = vadd.f32 %v652, %v664
    %v666 = vpop.f32.mrf.mxu0
    %667 = vdwg.mxu0
    %668 = vmatpush.bf16.msra.mxu0 %v503
    %669 = vmatpush.bf16.msra.mxu0 %v501
    %670 = vmatpush.bf16.msra.mxu0 %v499
    %671 = vmatpush.bf16.msra.mxu0 %v497
    %672 = vmatpush.bf16.msra.mxu0 %v495
    %673 = vmatpush.bf16.msra.mxu0 %v493
    %674 = vmatpush.bf16.msra.mxu0 %v491
    %675 = vmatpush.bf16.msra.mxu0 %v489
    %676 = vmatmul.bf16.gmra.mxu0 %v222
    %v677 = vpop.f32.mrf.mxu0
    %v678 = vadd.f32 %v293, %v677
    %v679 = vpop.f32.mrf.mxu0
    %680 = vdwg.mxu0
    %681 = vmatpush.bf16.msra.mxu0 %v519
    %682 = vmatpush.bf16.msra.mxu0 %v517
    %683 = vmatpush.bf16.msra.mxu0 %v515
    %684 = vmatpush.bf16.msra.mxu0 %v513
    %685 = vmatpush.bf16.msra.mxu0 %v511
    %686 = vmatpush.bf16.msra.mxu0 %v509
    %687 = vmatpush.bf16.msra.mxu0 %v507
    %688 = vmatpush.bf16.msra.mxu0 %v505
    %689 = vmatmul.bf16.gmra.mxu0 %v223
    %v690 = vpop.f32.mrf.mxu0
    %v691 = vadd.f32 %v678, %v690
    %v692 = vpop.f32.mrf.mxu0
    %693 = vdwg.mxu0
    %694 = vmatpush.bf16.msra.mxu0 %v535
    %695 = vmatpush.bf16.msra.mxu0 %v533
    %696 = vmatpush.bf16.msra.mxu0 %v531
    %697 = vmatpush.bf16.msra.mxu0 %v529
    %698 = vmatpush.bf16.msra.mxu0 %v527
    %699 = vmatpush.bf16.msra.mxu0 %v525
    %700 = vmatpush.bf16.msra.mxu0 %v523
    %701 = vmatpush.bf16.msra.mxu0 %v521
    %702 = vmatmul.bf16.gmra.mxu0 %v224
    %v703 = vpop.f32.mrf.mxu0
    %v704 = vadd.f32 %v691, %v703
    %v705 = vpop.f32.mrf.mxu0
    %706 = vdwg.mxu0
    %707 = vmatpush.bf16.msra.mxu0 %v551
    %708 = vmatpush.bf16.msra.mxu0 %v549
    %709 = vmatpush.bf16.msra.mxu0 %v547
    %710 = vmatpush.bf16.msra.mxu0 %v545
    %711 = vmatpush.bf16.msra.mxu0 %v543
    %712 = vmatpush.bf16.msra.mxu0 %v541
    %713 = vmatpush.bf16.msra.mxu0 %v539
    %714 = vmatpush.bf16.msra.mxu0 %v537
    %715 = vmatmul.bf16.gmra.mxu0 %v225
    %v716 = vpop.f32.mrf.mxu0
    %v717 = vadd.f32 %v704, %v716
    %v718 = vpop.f32.mrf.mxu0
    %719 = vdwg.mxu0
    %v720 = vmax.f32 %v665, 0.0
    %v721 = vmax.f32 %v717, 0.0
    %v722 = vpack.c.bf16 %v720, %v720
    %v723 = vpack.c.bf16 %v721, %v721
    %v724 = vld [vmem:[#allocation10] sm:$0xf]
    %v725 = vld [vmem:[#allocation10 + $0x4] sm:$0xf]
    %v726 = vld [vmem:[#allocation10 + $0x8] sm:$0xf]
    %v727 = vld [vmem:[#allocation10 + $0xc] sm:$0xf]
    %v728 = vld [vmem:[#allocation10 + $0x10] sm:$0xf]
    %v729 = vld [vmem:[#allocation10 + $0x14] sm:$0xf]
    %v730 = vld [vmem:[#allocation10 + $0x18] sm:$0xf]
    %v731 = vld [vmem:[#allocation10 + $0x1c] sm:$0xf]
    %v732 = vld [vmem:[#allocation10 + $0x20] sm:$0xf]
    %v733 = vld [vmem:[#allocation10 + $0x24] sm:$0xf]
    %v734 = vld [vmem:[#allocation10 + $0x28] sm:$0xf]
    %v735 = vld [vmem:[#allocation10 + $0x2c] sm:$0xf]
    %v736 = vld [vmem:[#allocation10 + $0x30] sm:$0xf]
    %v737 = vld [vmem:[#allocation10 + $0x34] sm:$0xf]
    %v738 = vld [vmem:[#allocation10 + $0x38] sm:$0xf]
    %v739 = vld [vmem:[#allocation10 + $0x3c] sm:$0xf]
    %v740 = vld [vmem:[#allocation10 + $0x40] sm:$0xf]
    %v741 = vld [vmem:[#allocation10 + $0x44] sm:$0xf]
    %v742 = vld [vmem:[#allocation10 + $0x48] sm:$0xf]
    %v743 = vld [vmem:[#allocation10 + $0x4c] sm:$0xf]
    %v744 = vld [vmem:[#allocation10 + $0x50] sm:$0xf]
    %v745 = vld [vmem:[#allocation10 + $0x54] sm:$0xf]
    %v746 = vld [vmem:[#allocation10 + $0x58] sm:$0xf]
    %v747 = vld [vmem:[#allocation10 + $0x5c] sm:$0xf]
    %v748 = vld [vmem:[#allocation10 + $0x60] sm:$0xf]
    %v749 = vld [vmem:[#allocation10 + $0x64] sm:$0xf]
    %v750 = vld [vmem:[#allocation10 + $0x68] sm:$0xf]
    %v751 = vld [vmem:[#allocation10 + $0x6c] sm:$0xf]
    %v752 = vld [vmem:[#allocation10 + $0x70] sm:$0xf]
    %v753 = vld [vmem:[#allocation10 + $0x74] sm:$0xf]
    %v754 = vld [vmem:[#allocation10 + $0x78] sm:$0xf]
    %v755 = vld [vmem:[#allocation10 + $0x7c] sm:$0xf]
    %v756 = vld [vmem:[%s6] sm:$0x1]
    %v758 = vperm.slane %v756, 0
    %v792 = vunpack.c.l.b16 %v724
    %v793 = vunpack.c.l.b16 %v725
    %v794 = vunpack.c.l.b16 %v726
    %v795 = vunpack.c.l.b16 %v727
    %v796 = vunpack.c.l.b16 %v728
    %v797 = vunpack.c.l.b16 %v729
    %v798 = vunpack.c.l.b16 %v730
    %v799 = vunpack.c.l.b16 %v731
    %v800 = vunpack.c.l.b16 %v732
    %v801 = vunpack.c.l.b16 %v733
    %v802 = vunpack.c.l.b16 %v734
    %v803 = vunpack.c.l.b16 %v735
    %v804 = vunpack.c.l.b16 %v736
    %v805 = vunpack.c.l.b16 %v737
    %v806 = vunpack.c.l.b16 %v738
    %v807 = vunpack.c.l.b16 %v739
    %v808 = vunpack.c.l.b16 %v740
    %v809 = vunpack.c.l.b16 %v741
    %v810 = vunpack.c.l.b16 %v742
    %v811 = vunpack.c.l.b16 %v743
    %v812 = vunpack.c.l.b16 %v744
    %v813 = vunpack.c.l.b16 %v745
    %v814 = vunpack.c.l.b16 %v746
    %v815 = vunpack.c.l.b16 %v747
    %v816 = vunpack.c.l.b16 %v748
    %v817 = vunpack.c.l.b16 %v749
    %v818 = vunpack.c.l.b16 %v750
    %v819 = vunpack.c.l.b16 %v751
    %v820 = vunpack.c.l.b16 %v752
    %v821 = vunpack.c.l.b16 %v753
    %v822 = vunpack.c.l.b16 %v754
    %v823 = vunpack.c.l.b16 %v755
    %v824 = vpack.c.b16 %v793, %v792
    %v825 = vpack.c.b16 %v795, %v794
    %v826 = vpack.c.b16 %v797, %v796
    %v827 = vpack.c.b16 %v799, %v798
    %v828 = vpack.c.b16 %v801, %v800
    %v829 = vpack.c.b16 %v803, %v802
    %v830 = vpack.c.b16 %v805, %v804
    %v831 = vpack.c.b16 %v807, %v806
    %v832 = vpack.c.b16 %v809, %v808
    %v833 = vpack.c.b16 %v811, %v810
    %v834 = vpack.c.b16 %v813, %v812
    %v835 = vpack.c.b16 %v815, %v814
    %v836 = vpack.c.b16 %v817, %v816
    %v837 = vpack.c.b16 %v819, %v818
    %v838 = vpack.c.b16 %v821, %v820
    %v839 = vpack.c.b16 %v823, %v822
    %856 = vmatpush.bf16.msra.mxu0 %v831
    %857 = vmatpush.bf16.msra.mxu0 %v830
    %858 = vmatpush.bf16.msra.mxu0 %v829
    %859 = vmatpush.bf16.msra.mxu0 %v828
    %860 = vmatpush.bf16.msra.mxu0 %v827
    %861 = vmatpush.bf16.msra.mxu0 %v826
    %862 = vmatpush.bf16.msra.mxu0 %v825
    %863 = vmatpush.bf16.msra.mxu0 %v824
    %864 = vmatmul.bf16.gmra.mxu0 %v722
    %v865 = vpop.f32.mrf.mxu0
    %v866 = vadd.f32 %v758, %v865
    %v867 = vpop.f32.mrf.mxu0
    %868 = vdwg.mxu0
    %869 = vmatpush.bf16.msra.mxu0 %v839
    %870 = vmatpush.bf16.msra.mxu0 %v838
    %871 = vmatpush.bf16.msra.mxu0 %v837
    %872 = vmatpush.bf16.msra.mxu0 %v836
    %873 = vmatpush.bf16.msra.mxu0 %v835
    %874 = vmatpush.bf16.msra.mxu0 %v834
    %875 = vmatpush.bf16.msra.mxu0 %v833
    %876 = vmatpush.bf16.msra.mxu0 %v832
    %877 = vmatmul.bf16.gmra.mxu0 %v723
    %v878 = vpop.f32.mrf.mxu0
    %v879 = vadd.f32 %v866, %v878
    %v880 = vpop.f32.mrf.mxu0
    %881 = vdwg.mxu0
    %vm882 = vcmask 130048
    %883 = vst.msk [vmem:[#allocation11] sm:$0xff] %vm882, %v879
    // Predicated region
    $region50: #{_lambda_.1} parent=1 // pred_check
      _
    $region51: #{_lambda_.1} parent=1 // pred_check_branch
      %885 = sbr.rel (0) target = $region53
    $region52: #{_lambda_.1} parent=1 // pred_region
      %887 = vsyncadd [#allocation4], 0
      %s889 = sshll.u32 [#allocation11], 4
      %s890 = int_to_ptr.vmem [resolvable:$true] %s889
      %s891 = sshll.u32 %s7, 4
      %s892 = int_to_ptr.hbm [resolvable:$true] %s891
      %894 = dma.vmem_to_hbm [thread:$0]  %s890, 128, %s892, [#allocation4]
    $region53: #{_lambda_.1} parent=1 // pred_fallthru
      _
    // Predicated region
    $region54: #{_lambda_.1} parent=1 // pred_check
      _
    $region55: #{_lambda_.1} parent=1 // pred_check_branch
      %896 = sbr.rel (0) target = $region57
    $region56: #{_lambda_.1} parent=1 // pred_region
      %898 = dma.done [#allocation4], 128
    $region57: #{_lambda_.1} parent=1 // pred_fallthru
      _
    %899 = vsyncpa [#allocation3], 1
    %900 = vsyncpa [#allocation6], 1
    %901 = vsyncpa [#allocation9], 1
    %902 = vsyncpa [#allocation4], 1

</llo_original>
